<compile_context>
chip_gen: v7x
topology: tpu7x:2x2x1
jax: 0.10.0
libtpu: 0.0.40
codegen_flags: <defaults>
</compile_context>

<pallas_src>
import functools
from typing import NamedTuple, Optional

import jax
import jax.numpy as jnp
from jax.experimental import pallas as pl
from jax.experimental.pallas import tpu as pltpu


def _round_up(a, b):
    return ((a + b - 1) // b) * b


def _apply_activation(y, activation):
    if activation is None:
        return y
    if activation == "relu":
        return jnp.maximum(y, 0.0)
    if activation == "tanh":
        return jnp.tanh(y)
    if activation == "sigmoid":
        return jax.nn.sigmoid(y)
    raise ValueError(f"unsupported activation: {activation}")


# ----------------------------------------------------------------------------
# Per-generation configuration
# ----------------------------------------------------------------------------

class _TpuConfig(NamedTuple):
    kind: str
    num_cores: int           # TensorCores sharing the grid (v7x megacore = 2)
    tile_m: int
    tile_n: int
    tile_k: int
    vmem_limit: Optional[int]  # vmem_limit_bytes to request (None = default)
    vmem_budget: int           # working-set budget used for tile shrinking
    mxu_dtype: object


def _tpu_config(mxu_dtype=jnp.bfloat16) -> _TpuConfig:
    try:
        kind = jax.devices()[0].device_kind.lower()
    except Exception:  # pragma: no cover - defensive
        kind = ""
    num_cores = 2 if "v7" in kind else 1
    if "v6" in kind:
        # v6e: 918 TF/s vs ~1.4 TB/s -> need ~1.5k output tiles to be MXU-bound.
        tm, tn, tk, limit = 1536, 1536, 1024, 100 << 20
    elif "v7" in kind:
        # v7x: only 64 MiB physical VMEM per TC; 1024^2 tiles are compute-bound.
        tm, tn, tk, limit = 1024, 1024, 1024, 52 << 20
    elif "v5 lite" in kind or "v5lite" in kind or "v5e" in kind:
        # v5e: 512x512 already clears the ~240 fl/B roofline.
        tm, tn, tk, limit = 512, 512, 1024, 100 << 20
    elif "v5" in kind or "v4" in kind:
        tm, tn, tk, limit = 1024, 1024, 1024, 100 << 20
    else:
        tm, tn, tk, limit = 512, 512, 512, None
    budget = (limit - (12 << 20)) if limit is not None else (14 << 20)
    return _TpuConfig(kind, num_cores, tm, tn, tk, limit, budget, mxu_dtype)


# ----------------------------------------------------------------------------
# One-time weight packing (pad + cast + transpose)
# ----------------------------------------------------------------------------

class PackedLinear(NamedTuple):
    w: jax.Array                 # (Kp, Np) mxu_dtype, zero-padded, pre-transposed
    b: Optional[jax.Array]       # (1, Np) float32 or None
    n: int                       # logical out features
    k: int                       # logical in features
    tn: int
    tk: int


def pack_linear(weight, bias, cfg: _TpuConfig) -> PackedLinear:
    """Pack a PyTorch-layout (N, K) weight once: pad, bf16-cast, transpose."""
    N, K = weight.shape
    tn = min(cfg.tile_n, _round_up(N, 128))
    tk = min(cfg.tile_k, _round_up(K, 128))
    Np, Kp = _round_up(N, tn), _round_up(K, tk)
    w_p = jnp.pad(weight, ((0, Np - N), (0, Kp - K))).astype(cfg.mxu_dtype).T
    b_p = None
    if bias is not None:
        b_p = jnp.pad(bias.astype(jnp.float32), (0, Np - N)).reshape(1, Np)
    return PackedLinear(w_p, b_p, N, K, tn, tk)


class PackedFFN(NamedTuple):
    cfg: _TpuConfig
    activation: Optional[str]
    fused: bool
    d_in: int
    d_out: int
    # fused-path tensors (None when not fused)
    w1f: Optional[jax.Array]     # (K1p, Hp)  mxu_dtype
    b1f: Optional[jax.Array]     # (1, Hp)    float32
    w2f: Optional[jax.Array]     # (Hp, N2p)  mxu_dtype
    b2f: Optional[jax.Array]     # (1, N2p)   float32
    tn2: int
    # two-pass packed layers (None when fused)
    p1: Optional[PackedLinear]
    p2: Optional[PackedLinear]


def pack_linear_feedforward(w1, b1, w2, b2, *, activation="relu",
                            mxu_dtype=jnp.bfloat16) -> PackedFFN:
    """One-time packing of both FFN layers (PyTorch (out, in) layout in)."""
    cfg = _tpu_config(mxu_dtype)
    d_hid, d_in = w1.shape
    d_out, d_hid2 = w2.shape
    assert d_hid == d_hid2, (w1.shape, w2.shape)

    # ---- try the fused single-kernel layout --------------------------------
    K1p = _round_up(d_in, 128)
    Hp = _round_up(d_hid, 128)
    tn2 = min(cfg.tile_n, _round_up(d_out, 128))
    N2p = _round_up(d_out, tn2)
    tm = cfg.tile_m
    msz = jnp.dtype(mxu_dtype).itemsize
    fused_need = (
        2 * (tm * K1p + K1p * Hp + Hp * tn2) * msz   # double-buffered bf16 inputs
        + tm * Hp * msz                              # hidden VMEM scratch
        + 2 * tm * tn2 * 4                           # output double buffer (<= f32)
        + tm * min(Hp, 512) * 4                      # f32 dot intermediate (chunked)
        + 2 * (Hp + tn2) * 4                         # biases
    )
    if fused_need <= cfg.vmem_budget:
        w1f = jnp.pad(w1, ((0, Hp - d_hid), (0, K1p - d_in))).astype(mxu_dtype).T
        w2f = jnp.pad(w2, ((0, N2p - d_out), (0, Hp - d_hid))).astype(mxu_dtype).T
        b1f = (jnp.pad(b1.astype(jnp.float32), (0, Hp - d_hid)).reshape(1, Hp)
               if b1 is not None else None)
        b2f = (jnp.pad(b2.astype(jnp.float32), (0, N2p - d_out)).reshape(1, N2p)
               if b2 is not None else None)
        return PackedFFN(cfg, activation, True, d_in, d_out,
                         w1f, b1f, w2f, b2f, tn2, None, None)

    # ---- fall back to two tiled pallas_call matmuls -------------------------
    p1 = pack_linear(w1, b1, cfg)
    p2 = pack_linear(w2, b2, cfg)
    return PackedFFN(cfg, activation, False, d_in, d_out,
                     None, None, None, None, 0, p1, p2)


# ----------------------------------------------------------------------------
# Kernel 1: tiled linear  y = act(x @ W + b)   (W pre-transposed to (K, N))
# ----------------------------------------------------------------------------

def _linear_kernel(*refs, activation, has_bias):
    if has_bias:
        x_ref, w_ref, b_ref, o_ref, acc_ref = refs
    else:
        x_ref, w_ref, o_ref, acc_ref = refs
        b_ref = None

    @pl.when(pl.program_id(2) == 0)
    def _():
        acc_ref[...] = jnp.zeros_like(acc_ref)

    acc_ref[...] += jnp.dot(x_ref[...], w_ref[...],
                            preferred_element_type=jnp.float32)

    @pl.when(pl.program_id(2) == pl.num_programs(2) - 1)
    def _():
        y = acc_ref[...]
        if b_ref is not None:
            y = y + b_ref[...]
        o_ref[...] = _apply_activation(y, activation).astype(o_ref.dtype)


def _linear_padded(x2d, packed: PackedLinear, cfg: _TpuConfig, *,
                   activation=None, out_dtype=None):
    """Tiled linear on a 2-D input. Returns the PADDED (Mp, Np) output.

    Input columns beyond the logical K are allowed; they line up with the
    zero-padded weight rows and therefore contribute nothing.
    """
    Kp, Np = packed.w.shape
    out_dtype = out_dtype or x2d.dtype
    Mr, Kin = x2d.shape

    if Kin < Kp:
        x2d = jnp.pad(x2d, ((0, 0), (0, Kp - Kin)))
    elif Kin > Kp:
        x2d = x2d[:, :Kp]

    tn, tk = packed.tn, packed.tk
    tm = min(cfg.tile_m, _round_up(Mr, 16))

    mxu_size = jnp.dtype(cfg.mxu_dtype).itemsize
    out_size = jnp.dtype(out_dtype).itemsize

    def _need(tm_):
        return (2 * (tm_ * tk + tk * tn) * mxu_size
                + 2 * tm_ * tn * out_size + tm_ * tn * 4 + 2 * tn * 4)

    while tm > 16 and _need(tm) > cfg.vmem_budget:
        tm = max(16, _round_up(tm // 2, 16))
    Mp = _round_up(Mr, tm)

    # Keep both TensorCores busy (v7x): avoid a 1x1 parallel grid by splitting
    # N when M cannot be split (new tn must still divide Np).
    if cfg.num_cores > 1 and (Mp // tm) * (Np // tn) < cfg.num_cores:
        for cand in range(tn - 128, 127, -128):
            if Np % cand == 0:
                tn = cand
                break

    x_p = jnp.pad(x2d, ((0, Mp - Mr), (0, 0))).astype(cfg.mxu_dtype)

    has_bias = packed.b is not None
    args = [x_p, packed.w]
    in_specs = [
        pl.BlockSpec((tm, tk), lambda i, j, k: (i, k)),   # activations
        pl.BlockSpec((tk, tn), lambda i, j, k: (k, j)),   # weight, lane-dense in N
    ]
    if has_bias:
        args.append(packed.b)
        in_specs.append(pl.BlockSpec((1, tn), lambda i, j, k: (0, j)))

    kernel = functools.partial(_linear_kernel, activation=activation,
                               has_bias=has_bias)

    gm, gn, gk = Mp // tm, Np // tn, Kp // tk
    cost = pl.CostEstimate(
        flops=2 * Mp * Kp * Np,
        transcendentals=(Mp * Np if activation in ("tanh", "sigmoid") else 0),
        bytes_accessed=(gn * Mp * Kp * mxu_size          # x re-streamed per N tile
                        + gm * Kp * Np * mxu_size        # W re-streamed per M tile
                        + Mp * Np * out_size
                        + (gm * Np * 4 if has_bias else 0)),
    )

    cp = dict(dimension_semantics=("parallel", "parallel", "arbitrary"))
    if cfg.vmem_limit is not None:
        cp["vmem_limit_bytes"] = cfg.vmem_limit

    return pl.pallas_call(
        kernel,
        out_shape=jax.ShapeDtypeStruct((Mp, Np), out_dtype),
        grid_spec=pltpu.PrefetchScalarGridSpec(
            num_scalar_prefetch=0,
            grid=(gm, gn, gk),
            in_specs=in_specs,
            out_specs=pl.BlockSpec((tm, tn), lambda i, j, k: (i, j)),
            scratch_shapes=[pltpu.VMEM((tm, tn), jnp.float32)],
        ),
        compiler_params=pltpu.CompilerParams(**cp),
        cost_estimate=cost,
    )(*args)


# ----------------------------------------------------------------------------
# Kernel 2: fused FFN — hidden activation lives in VMEM scratch
# ----------------------------------------------------------------------------

def _ffn_fused_kernel(*refs, activation, h_chunk, has_b1, has_b2):
    it = iter(refs)
    x_ref = next(it)
    w1_ref = next(it)
    b1_ref = next(it) if has_b1 else None
    w2_ref = next(it)
    b2_ref = next(it) if has_b2 else None
    o_ref = next(it)
    h_ref = next(it)

    # Compute hidden = act(x @ W1 + b1) once per M-tile (j == 0), reuse across
    # all output N-tiles.  Chunk the lane dim to bound the f32 intermediate.
    @pl.when(pl.program_id(1) == 0)
    def _():
        hp = h_ref.shape[1]
        for c0 in range(0, hp, h_chunk):
            h = jnp.dot(x_ref[...], w1_ref[:, c0:c0 + h_chunk],
                        preferred_element_type=jnp.float32)
            if b1_ref is not None:
                h = h + b1_ref[:, c0:c0 + h_chunk]
            h_ref[:, c0:c0 + h_chunk] = _apply_activation(h, activation).astype(h_ref.dtype)

    y = jnp.dot(h_ref[...], w2_ref[...], preferred_element_type=jnp.float32)
    if b2_ref is not None:
        y = y + b2_ref[...]
    o_ref[...] = y.astype(o_ref.dtype)


def _ffn_fused(x2d, packed: PackedFFN, out_dtype):
    cfg = packed.cfg
    K1p, Hp = packed.w1f.shape
    _, N2p = packed.w2f.shape
    tn = packed.tn2

    Mr, Kin = x2d.shape
    tm = min(cfg.tile_m, _round_up(Mr, 16))
    Mp = _round_up(Mr, tm)
    x_p = jnp.pad(x2d, ((0, Mp - Mr), (0, K1p - Kin))).astype(cfg.mxu_dtype)

    h_chunk = Hp
    for cand in (512, 256, 128):
        if Hp % cand == 0:
            h_chunk = min(Hp, cand)
            break

    has_b1 = packed.b1f is not None
    has_b2 = packed.b2f is not None

    args = [x_p, packed.w1f]
    in_specs = [
        pl.BlockSpec((tm, K1p), lambda i, j: (i, 0)),      # x tile (per M-tile)
        pl.BlockSpec((K1p, Hp), lambda i, j: (0, 0)),      # W1 resident
    ]
    if has_b1:
        args.append(packed.b1f)
        in_specs.append(pl.BlockSpec((1, Hp), lambda i, j: (0, 0)))
    args.append(packed.w2f)
    in_specs.append(pl.BlockSpec((Hp, tn), lambda i, j: (0, j)))
    if has_b2:
        args.append(packed.b2f)
        in_specs.append(pl.BlockSpec((1, tn), lambda i, j: (0, j)))

    kernel = functools.partial(_ffn_fused_kernel, activation=packed.activation,
                               h_chunk=h_chunk, has_b1=has_b1, has_b2=has_b2)

    mxu_size = jnp.dtype(cfg.mxu_dtype).itemsize
    out_size = jnp.dtype(out_dtype).itemsize
    gm, gn = Mp // tm, N2p // tn
    cost = pl.CostEstimate(
        flops=2 * Mp * K1p * Hp + 2 * Mp * Hp * N2p,
        transcendentals=(Mp * Hp if packed.activation in ("tanh", "sigmoid") else 0),
        bytes_accessed=(Mp * K1p * mxu_size + K1p * Hp * mxu_size
                        + gm * Hp * N2p * mxu_size + Mp * N2p * out_size
                        + Hp * 4 + N2p * 4),
    )

    cp = dict(dimension_semantics=("parallel", "arbitrary"))
    if cfg.vmem_limit is not None:
        cp["vmem_limit_bytes"] = cfg.vmem_limit

    return pl.pallas_call(
        kernel,
        out_shape=jax.ShapeDtypeStruct((Mp, N2p), out_dtype),
        grid_spec=pltpu.PrefetchScalarGridSpec(
            num_scalar_prefetch=0,
            grid=(gm, gn),
            in_specs=in_specs,
            out_specs=pl.BlockSpec((tm, tn), lambda i, j: (i, j)),
            scratch_shapes=[pltpu.VMEM((tm, Hp), cfg.mxu_dtype)],
        ),
        compiler_params=pltpu.CompilerParams(**cp),
        cost_estimate=cost,
    )(*args)


# ----------------------------------------------------------------------------
# Forward pass
# ----------------------------------------------------------------------------

def linear_feedforward_apply(x, packed: PackedFFN):
    """LinearFeedforward.forward (inference mode) with pre-packed weights."""
    # TODO(synk): training-mode dropout (inverted-scaling Bernoulli mask via
    # pltpu.prng_*) is not implemented; inference dropout is the identity.
    cfg = packed.cfg
    orig_shape = x.shape
    assert orig_shape[-1] == packed.d_in, (orig_shape, packed.d_in)
    x2d = x.reshape(-1, packed.d_in)
    M = x2d.shape[0]
    out_dtype = x.dtype

    if packed.fused:
        out_p = _ffn_fused(x2d, packed, out_dtype)
    else:
        # Hidden stays PADDED and bf16 between the two calls — no HBM
        # slice/re-pad pass, half the intermediate HBM traffic.
        hidden_p = _linear_padded(x2d, packed.p1, cfg,
                                  activation=packed.activation,
                                  out_dtype=cfg.mxu_dtype)
        out_p = _linear_padded(hidden_p, packed.p2, cfg,
                               activation=None, out_dtype=out_dtype)

    out2d = out_p[:M, :packed.d_out]
    return out2d.reshape(*orig_shape[:-1], packed.d_out)


def linear_feedforward(x, w1, b1, w2, b2, *, activation="relu"):
    """Convenience wrapper (packs per call; pack once + apply for real use)."""
    packed = pack_linear_feedforward(w1, b1, w2, b2, activation=activation)
    return linear_feedforward_apply(x, packed)


def _ref_linear_feedforward(x, w1, b1, w2, b2, *, activation="relu"):
    """Pure-JAX f32 reference matching the PyTorch forward (eval mode)."""
    h = jnp.einsum("...i,oi->...o", x, w1) + b1
    h = _apply_activation(h, activation)
    return jnp.einsum("...i,oi->...o", h, w2) + b2


if __name__ == "__main__":
    # Small shapes consistent with the module: batch=2, seq=8, d_in=32, d_hid=64, d_out=32
    batch, seq, d_in, d_hid, d_out = 2, 8, 32, 64, 32
    activation = "relu"   # LinearFeedforward(d_in, d_hid, d_out, activation="relu")

    key = jax.random.PRNGKey(0)
    kx, kw1, kb1, kw2, kb2 = jax.random.split(key, 5)

    x = jax.random.normal(kx, (batch, seq, d_in), dtype=jnp.float32)

    # Deterministic parameter init (Kaiming-uniform-like, as nn.Linear does).
    bound1 = 1.0 / (d_in ** 0.5)
    w1 = jax.random.uniform(kw1, (d_hid, d_in), jnp.float32, -bound1, bound1)
    b1 = jax.random.uniform(kb1, (d_hid,), jnp.float32, -bound1, bound1)
    bound2 = 1.0 / (d_hid ** 0.5)
    w2 = jax.random.uniform(kw2, (d_out, d_hid), jnp.float32, -bound2, bound2)
    b2 = jax.random.uniform(kb2, (d_out,), jnp.float32, -bound2, bound2)

    ref = _ref_linear_feedforward(x, w1, b1, w2, b2, activation=activation)

    # --- fused path (default when the working set fits VMEM) ----------------
    packed = pack_linear_feedforward(w1, b1, w2, b2, activation=activation)
    apply_fn = jax.jit(lambda xx: linear_feedforward_apply(xx, packed))
    out = jax.block_until_ready(apply_fn(x))
    assert out.shape == (batch, seq, d_out), out.shape
    # bf16 MXU operands with f32 accumulation -> relaxed tolerance vs f32 reference.
    assert jnp.allclose(out, ref, atol=3e-2, rtol=3e-2), (
        "fused mismatch: max abs err = %f" % float(jnp.max(jnp.abs(out - ref))))

    # --- two-pass fallback path (exercised explicitly for coverage) ---------
    cfg = packed.cfg
    packed_2p = PackedFFN(cfg, activation, False, d_in, d_out,
                          None, None, None, None, 0,
                          pack_linear(w1, b1, cfg), pack_linear(w2, b2, cfg))
    apply_2p = jax.jit(lambda xx: linear_feedforward_apply(xx, packed_2p))
    out2 = jax.block_until_ready(apply_2p(x))
    assert out2.shape == (batch, seq, d_out), out2.shape
    assert jnp.allclose(out2, ref, atol=3e-2, rtol=3e-2), (
        "two-pass mismatch: max abs err = %f" % float(jnp.max(jnp.abs(out2 - ref))))

    print("KERNEL_OK")
</pallas_src>

<mosaic_0001>
module attributes {stable_mosaic.version = 11 : i64} {
  func.func @_ffn_fused_kernel(%arg0: i32, %arg1: i32, %arg2: memref<16x128xbf16, #tpu.memory_space<vmem>>, %arg3: memref<128x128xbf16, #tpu.memory_space<vmem>>, %arg4: memref<1x128xf32, #tpu.memory_space<vmem>>, %arg5: memref<128x128xbf16, #tpu.memory_space<vmem>>, %arg6: memref<1x128xf32, #tpu.memory_space<vmem>>, %arg7: memref<16x128xf32, #tpu.memory_space<vmem>>, %arg8: memref<16x128xbf16, #tpu.memory_space<vmem>>) attributes {dimension_semantics = [#tpu.dimension_semantics<parallel>, #tpu.dimension_semantics<arbitrary>], iteration_bounds = array<i64: 1, 1>, scalar_prefetch = 0 : i64, scratch_operands = 1 : i64, tpu.core_type = #tpu.core_type<tc>, window_params = [{transform_indices = @transform_0, window_bounds = array<i64: 16, 128>}, {pipeline_mode = #tpu.pipeline_mode<synchronous>, transform_indices = @transform_1, window_bounds = array<i64: 128, 128>}, {pipeline_mode = #tpu.pipeline_mode<synchronous>, transform_indices = @transform_2, window_bounds = array<i64: 1, 128>}, {transform_indices = @transform_3, window_bounds = array<i64: 128, 128>}, {transform_indices = @transform_4, window_bounds = array<i64: 1, 128>}, {transform_indices = @transform_5, window_bounds = array<i64: 16, 128>}]} {
    %c0_i32 = arith.constant 0 : i32
    %0 = arith.cmpi eq, %arg1, %c0_i32 : i32
    %1 = arith.extui %0 : i1 to i32
    %c0_i32_0 = arith.constant 0 : i32
    %2 = arith.cmpi ne, %1, %c0_i32_0 : i32
    scf.if %2 {
      %c0_8 = arith.constant 0 : index
      %c0_9 = arith.constant 0 : index
      %10 = vector.load %arg2[%c0_8, %c0_9] : memref<16x128xbf16, #tpu.memory_space<vmem>>, vector<16x128xbf16>
      %c0_10 = arith.constant 0 : index
      %c0_11 = arith.constant 0 : index
      %11 = vector.load %arg3[%c0_10, %c0_11] : memref<128x128xbf16, #tpu.memory_space<vmem>>, vector<128x128xbf16>
      %cst_12 = arith.constant dense<0.000000e+00> : vector<16x128xf32>
      %12 = tpu.matmul %10, %11, %cst_12 {dimension_numbers = #tpu.dot_dimension_numbers<[1], [0], [0], [1], [0, 0, 1, 1], [], []>} : vector<16x128xbf16>, vector<128x128xbf16>, vector<16x128xf32> -> vector<16x128xf32>
      %c0_13 = arith.constant 0 : index
      %c0_14 = arith.constant 0 : index
      %13 = vector.load %arg4[%c0_13, %c0_14] : memref<1x128xf32, #tpu.memory_space<vmem>>, vector<1x128xf32>
      %14 = vector.broadcast %13 : vector<1x128xf32> to vector<16x128xf32>
      %15 = arith.addf %12, %14 : vector<16x128xf32>
      %cst_15 = arith.constant 0.000000e+00 : f32
      %16 = vector.broadcast %cst_15 : f32 to vector<16x128xf32>
      %17 = arith.maximumf %15, %16 : vector<16x128xf32>
      %18 = arith.truncf %17 : vector<16x128xf32> to vector<16x128xbf16>
      %c0_16 = arith.constant 0 : index
      %c0_17 = arith.constant 0 : index
      %19 = vector.load %arg8[%c0_16, %c0_17] : memref<16x128xbf16, #tpu.memory_space<vmem>>, vector<16x128xbf16>
      tpu.vector_store %arg8[%c0_16, %c0_17], %18 {strides = array<i32>} : memref<16x128xbf16, #tpu.memory_space<vmem>>, vector<16x128xbf16>,
    } else {
    }
    %c0 = arith.constant 0 : index
    %c0_1 = arith.constant 0 : index
    %3 = vector.load %arg8[%c0, %c0_1] : memref<16x128xbf16, #tpu.memory_space<vmem>>, vector<16x128xbf16>
    %c0_2 = arith.constant 0 : index
    %c0_3 = arith.constant 0 : index
    %4 = vector.load %arg5[%c0_2, %c0_3] : memref<128x128xbf16, #tpu.memory_space<vmem>>, vector<128x128xbf16>
    %cst = arith.constant dense<0.000000e+00> : vector<16x128xf32>
    %5 = tpu.matmul %3, %4, %cst {dimension_numbers = #tpu.dot_dimension_numbers<[1], [0], [0], [1], [0, 0, 1, 1], [], []>} : vector<16x128xbf16>, vector<128x128xbf16>, vector<16x128xf32> -> vector<16x128xf32>
    %c0_4 = arith.constant 0 : index
    %c0_5 = arith.constant 0 : index
    %6 = vector.load %arg6[%c0_4, %c0_5] : memref<1x128xf32, #tpu.memory_space<vmem>>, vector<1x128xf32>
    %7 = vector.broadcast %6 : vector<1x128xf32> to vector<16x128xf32>
    %8 = arith.addf %5, %7 : vector<16x128xf32>
    %c0_6 = arith.constant 0 : index
    %c0_7 = arith.constant 0 : index
    %9 = vector.load %arg7[%c0_6, %c0_7] : memref<16x128xf32, #tpu.memory_space<vmem>>, vector<16x128xf32>
    tpu.vector_store %arg7[%c0_6, %c0_7], %8 {strides = array<i32>} : memref<16x128xf32, #tpu.memory_space<vmem>>, vector<16x128xf32>,
    return
  }
  func.func @transform_0(%arg0: i32, %arg1: i32) -> (i32, i32) {
    %c0_i32 = arith.constant 0 : i32
    %c0_i32_0 = arith.constant 0 : i32
    return %arg0, %c0_i32 : i32, i32
  }
  func.func @transform_1(%arg0: i32, %arg1: i32) -> (i32, i32) {
    %c0_i32 = arith.constant 0 : i32
    %c0_i32_0 = arith.constant 0 : i32
    %c0_i32_1 = arith.constant 0 : i32
    return %c0_i32, %c0_i32_0 : i32, i32
  }
  func.func @transform_2(%arg0: i32, %arg1: i32) -> (i32, i32) {
    %c0_i32 = arith.constant 0 : i32
    %c0_i32_0 = arith.constant 0 : i32
    %c0_i32_1 = arith.constant 0 : i32
    return %c0_i32, %c0_i32_0 : i32, i32
  }
  func.func @transform_3(%arg0: i32, %arg1: i32) -> (i32, i32) {
    %c0_i32 = arith.constant 0 : i32
    %c0_i32_0 = arith.constant 0 : i32
    return %c0_i32, %arg1 : i32, i32
  }
  func.func @transform_4(%arg0: i32, %arg1: i32) -> (i32, i32) {
    %c0_i32 = arith.constant 0 : i32
    %c0_i32_0 = arith.constant 0 : i32
    return %c0_i32, %arg1 : i32, i32
  }
  func.func @transform_5(%arg0: i32, %arg1: i32) -> (i32, i32) {
    %c0_i32 = arith.constant 0 : i32
    return %arg0, %arg1 : i32, i32
  }
}

</mosaic_0001>

<llo_original>
// kernel: _lambda_.1
$region0: #{_lambda_.1}
  #allocation0 [shape = 'u32[]', space=smem, size = 0x4, offset = 0x4, fixed_abs, tag = 'smem constant byte address 0x4 - core index']
  #allocation1 [shape = 'u32[144,128]{1,0:T(1,128)}', space=vmem, size = 0x12000, scoped, tag = 'internal scratch']
  #allocation2 [shape = 'bf16[16,128]{1,0:T(16,128)(2,1)}', space=vmem, size = 0x1000, scoped, tag = 'scratch operand']
  %s0 = inlined_call_operand.vmem [shape: bf16[16,128], index: 0, kind: input, shape index: {}]
  %s1 = inlined_call_operand.hbm [shape: bf16[128,128], index: 1, kind: input, shape index: {}]
  %s2 = inlined_call_operand.vmem [shape: f32[1,128], index: 2, kind: input, shape index: {}]
  %s3 = inlined_call_operand.vmem [shape: bf16[128,128], index: 3, kind: input, shape index: {}]
  %s4 = inlined_call_operand.vmem [shape: f32[1,128], index: 4, kind: input, shape index: {}]
  %s5 = inlined_call_operand.vmem [shape: f32[16,128], index: 5, kind: output, shape index: {}]
  %s6 = sld [smem:[#allocation0]]
  $region38: #{_lambda_.1} parent=0
    _
  %s8 = ssub.s32 1, %s6
  %s9 = scalar_select 0, %s8, %s6
  $region1: #{_lambda_.1} parent=0
    #allocation3 [shape = 'u8[32768]{0}', space=vmem, size = 0x8000, scoped, tag = 'input window, operand 1, single buffered']
    #allocation4 [shape = 's32[1]{0}', space=sflag, size = 0x4, scoped, tag = 'scoped memory for _lambda_.1']
    %10 = vsyncpa [#allocation4], 0
    // Predicated region
    $region2: #{_lambda_.1} parent=1 // pred_check
      _
    $region3: #{_lambda_.1} parent=1 // pred_check_branch
      %12 = sbr.rel (0) target = $region5
    $region4: #{_lambda_.1} parent=1 // pred_region
      _
    $region5: #{_lambda_.1} parent=1 // pred_fallthru
      _
    // Predicated region
    $region6: #{_lambda_.1} parent=1 // pred_check
      _
    $region7: #{_lambda_.1} parent=1 // pred_check_branch
      %14 = sbr.rel (0) target = $region9
    $region8: #{_lambda_.1} parent=1 // pred_region
      %s16 = ssub.s32 1024, 1024
      %17 = vsyncadd [#allocation4], %s16
      %s18 = sshll.u32 [#allocation3], 4
      %s19 = int_to_ptr.vmem [resolvable:$true] %s18
      %24 = dma.hbm_to_vmem [thread:$0]  %s1, 1024, %s19, [#allocation4], 64, 64, 4
    $region9: #{_lambda_.1} parent=1 // pred_fallthru
      _
    // Predicated region
    $region10: #{_lambda_.1} parent=1 // pred_check
      _
    $region11: #{_lambda_.1} parent=1 // pred_check_branch
      %26 = sbr.rel (0) target = $region13
    $region12: #{_lambda_.1} parent=1 // pred_region
      _
    $region13: #{_lambda_.1} parent=1 // pred_fallthru
      _
    // Predicated region
    $region14: #{_lambda_.1} parent=1 // pred_check
      _
    $region15: #{_lambda_.1} parent=1 // pred_check_branch
      %28 = sbr.rel (0) target = $region17
    $region16: #{_lambda_.1} parent=1 // pred_region
      _
    $region17: #{_lambda_.1} parent=1 // pred_fallthru
      _
    // Predicated region
    $region18: #{_lambda_.1} parent=1 // pred_check
      _
    $region19: #{_lambda_.1} parent=1 // pred_check_branch
      %30 = sbr.rel (0) target = $region21
    $region20: #{_lambda_.1} parent=1 // pred_region
      _
    $region21: #{_lambda_.1} parent=1 // pred_fallthru
      _
    // Predicated region
    $region22: #{_lambda_.1} parent=1 // pred_check
      _
    $region23: #{_lambda_.1} parent=1 // pred_check_branch
      %32 = sbr.rel (0) target = $region25
    $region24: #{_lambda_.1} parent=1 // pred_region
      %33 = dma.done [#allocation4], 1024
    $region25: #{_lambda_.1} parent=1 // pred_fallthru
      _
    %p35 = scmp.eq.s32.totalorder 0, 0
    // Predicated region
    $region26: #{_lambda_.1} parent=1 // pred_check
      %p36 = pneg %p35
    $region27: #{_lambda_.1} parent=1 // pred_check_branch
      %38 = sbr.rel (%p36) target = $region29
    $region28: #{_lambda_.1} parent=1 // pred_region
      %v39 = vld [vmem:[%s0] sm:$0xf]
      %v40 = vld [vmem:[%s0 + $0x4] sm:$0xf]
      %v41 = vld [vmem:[#allocation3] sm:$0xf]
      %v42 = vld [vmem:[#allocation3 + $0x4] sm:$0xf]
      %v43 = vld [vmem:[#allocation3 + $0x8] sm:$0xf]
      %v44 = vld [vmem:[#allocation3 + $0xc] sm:$0xf]
      %v45 = vld [vmem:[#allocation3 + $0x10] sm:$0xf]
      %v46 = vld [vmem:[#allocation3 + $0x14] sm:$0xf]
      %v47 = vld [vmem:[#allocation3 + $0x18] sm:$0xf]
      %v48 = vld [vmem:[#allocation3 + $0x1c] sm:$0xf]
      %v49 = vld [vmem:[#allocation3 + $0x20] sm:$0xf]
      %v50 = vld [vmem:[#allocation3 + $0x24] sm:$0xf]
      %v51 = vld [vmem:[#allocation3 + $0x28] sm:$0xf]
      %v52 = vld [vmem:[#allocation3 + $0x2c] sm:$0xf]
      %v53 = vld [vmem:[#allocation3 + $0x30] sm:$0xf]
      %v54 = vld [vmem:[#allocation3 + $0x34] sm:$0xf]
      %v55 = vld [vmem:[#allocation3 + $0x38] sm:$0xf]
      %v56 = vld [vmem:[#allocation3 + $0x3c] sm:$0xf]
      %v57 = vld [vmem:[%s2] sm:$0x1]
      %v59 = vlaneseq
      %v60 = vshrl.u32 %v59, 7
      %v61 = vsub.s32 0, %v60
      %v62 = vrot.slane %v57, %v61
      %v66 = vunpack.c.l.b16 %v39
      %v67 = vunpack.c.l.b16 %v40
      %v68 = vpack.c.b16 %v67, %v66
      %v86 = vunpack.c.l.b16 %v41
      %v87 = vunpack.c.l.b16 %v42
      %v88 = vunpack.c.l.b16 %v43
      %v89 = vunpack.c.l.b16 %v44
      %v90 = vunpack.c.l.b16 %v45
      %v91 = vunpack.c.l.b16 %v46
      %v92 = vunpack.c.l.b16 %v47
      %v93 = vunpack.c.l.b16 %v48
      %v94 = vunpack.c.l.b16 %v49
      %v95 = vunpack.c.l.b16 %v50
      %v96 = vunpack.c.l.b16 %v51
      %v97 = vunpack.c.l.b16 %v52
      %v98 = vunpack.c.l.b16 %v53
      %v99 = vunpack.c.l.b16 %v54
      %v100 = vunpack.c.l.b16 %v55
      %v101 = vunpack.c.l.b16 %v56
      %v102 = vpack.c.b16 %v87, %v86
      %v103 = vpack.c.b16 %v89, %v88
      %v104 = vpack.c.b16 %v91, %v90
      %v105 = vpack.c.b16 %v93, %v92
      %v106 = vpack.c.b16 %v95, %v94
      %v107 = vpack.c.b16 %v97, %v96
      %v108 = vpack.c.b16 %v99, %v98
      %v109 = vpack.c.b16 %v101, %v100
      %118 = vmatprep.subr.bf16.mxu0 0
      %119 = vmatpush1.bf16.msra.mxu0 %v102
      %120 = vmatprep.subr.bf16.mxu0 0
      %121 = vmatpush1.bf16.msra.mxu0 %v103
      %122 = vmatprep.subr.bf16.mxu0 0
      %123 = vmatpush1.bf16.msra.mxu0 %v104
      %124 = vmatprep.subr.bf16.mxu0 0
      %125 = vmatpush1.bf16.msra.mxu0 %v105
      %126 = vmatprep.subr.bf16.mxu0 0
      %127 = vmatpush1.bf16.msra.mxu0 %v106
      %128 = vmatprep.subr.bf16.mxu0 0
      %129 = vmatpush1.bf16.msra.mxu0 %v107
      %130 = vmatprep.subr.bf16.mxu0 0
      %131 = vmatpush1.bf16.msra.mxu0 %v108
      %132 = vmatprep.subr.bf16.mxu0 0
      %133 = vmatpush1.bf16.msra.mxu0 %v109
      %134 = vmatprep.subr.bf16.mxu0 0
      %135 = vmatpush1.bf16.msra.mxu0 0
      %136 = vmatprep.subr.bf16.mxu0 0
      %137 = vmatpush1.bf16.msra.mxu0 0
      %138 = vmatprep.subr.bf16.mxu0 0
      %139 = vmatpush1.bf16.msra.mxu0 0
      %140 = vmatprep.subr.bf16.mxu0 0
      %141 = vmatpush1.bf16.msra.mxu0 0
      %142 = vmatprep.subr.bf16.mxu0 0
      %143 = vmatpush1.bf16.msra.mxu0 0
      %144 = vmatprep.subr.bf16.mxu0 0
      %145 = vmatpush1.bf16.msra.mxu0 0
      %146 = vmatprep.subr.bf16.mxu0 0
      %147 = vmatpush1.bf16.msra.mxu0 0
      %148 = vmatprep.subr.bf16.mxu0 0
      %149 = vmatpush1.bf16.msra.mxu0 0
      %150 = vmatprep.mubr.bf16.mxu0 0
      %151 = vmatmul.mubr.bf16.gmra.mrb[0].mxu0 %v68
      %v152 = vpop.f32.mrb[0].mxu0
      %v153 = vadd.f32 %v62, %v152
      %v154 = vpop.f32.mrb[0].mxu0
      %v155 = vpop.f32.mrb[0].mxu0
      %v156 = vadd.f32 %v62, %v155
      %v157 = vpop.f32.mrb[0].mxu0
      %158 = vdwg.mxu0
      %v159 = vmax.f32 %v153, 0.0
      %v160 = vmax.f32 %v156, 0.0
      %v161 = vpack.c.bf16 %v160, %v159
      %162 = vst [vmem:[#allocation2] sm:$0xff] %v161
    $region29: #{_lambda_.1} parent=1 // pred_fallthru
      _
    %v163 = vld [vmem:[#allocation2] sm:$0xff]
    %v164 = vld [vmem:[%s3] sm:$0xf]
    %v165 = vld [vmem:[%s3 + $0x4] sm:$0xf]
    %v166 = vld [vmem:[%s3 + $0x8] sm:$0xf]
    %v167 = vld [vmem:[%s3 + $0xc] sm:$0xf]
    %v168 = vld [vmem:[%s3 + $0x10] sm:$0xf]
    %v169 = vld [vmem:[%s3 + $0x14] sm:$0xf]
    %v170 = vld [vmem:[%s3 + $0x18] sm:$0xf]
    %v171 = vld [vmem:[%s3 + $0x1c] sm:$0xf]
    %v172 = vld [vmem:[%s3 + $0x20] sm:$0xf]
    %v173 = vld [vmem:[%s3 + $0x24] sm:$0xf]
    %v174 = vld [vmem:[%s3 + $0x28] sm:$0xf]
    %v175 = vld [vmem:[%s3 + $0x2c] sm:$0xf]
    %v176 = vld [vmem:[%s3 + $0x30] sm:$0xf]
    %v177 = vld [vmem:[%s3 + $0x34] sm:$0xf]
    %v178 = vld [vmem:[%s3 + $0x38] sm:$0xf]
    %v179 = vld [vmem:[%s3 + $0x3c] sm:$0xf]
    %v180 = vld [vmem:[%s4] sm:$0x1]
    %v182 = vlaneseq
    %v183 = vshrl.u32 %v182, 7
    %v184 = vsub.s32 0, %v183
    %v185 = vrot.slane %v180, %v184
    %v203 = vunpack.c.l.b16 %v164
    %v204 = vunpack.c.l.b16 %v165
    %v205 = vunpack.c.l.b16 %v166
    %v206 = vunpack.c.l.b16 %v167
    %v207 = vunpack.c.l.b16 %v168
    %v208 = vunpack.c.l.b16 %v169
    %v209 = vunpack.c.l.b16 %v170
    %v210 = vunpack.c.l.b16 %v171
    %v211 = vunpack.c.l.b16 %v172
    %v212 = vunpack.c.l.b16 %v173
    %v213 = vunpack.c.l.b16 %v174
    %v214 = vunpack.c.l.b16 %v175
    %v215 = vunpack.c.l.b16 %v176
    %v216 = vunpack.c.l.b16 %v177
    %v217 = vunpack.c.l.b16 %v178
    %v218 = vunpack.c.l.b16 %v179
    %v219 = vpack.c.b16 %v204, %v203
    %v220 = vpack.c.b16 %v206, %v205
    %v221 = vpack.c.b16 %v208, %v207
    %v222 = vpack.c.b16 %v210, %v209
    %v223 = vpack.c.b16 %v212, %v211
    %v224 = vpack.c.b16 %v214, %v213
    %v225 = vpack.c.b16 %v216, %v215
    %v226 = vpack.c.b16 %v218, %v217
    %235 = vmatprep.subr.bf16.mxu0 0
    %236 = vmatpush1.bf16.msra.mxu0 %v219
    %237 = vmatprep.subr.bf16.mxu0 0
    %238 = vmatpush1.bf16.msra.mxu0 %v220
    %239 = vmatprep.subr.bf16.mxu0 0
    %240 = vmatpush1.bf16.msra.mxu0 %v221
    %241 = vmatprep.subr.bf16.mxu0 0
    %242 = vmatpush1.bf16.msra.mxu0 %v222
    %243 = vmatprep.subr.bf16.mxu0 0
    %244 = vmatpush1.bf16.msra.mxu0 %v223
    %245 = vmatprep.subr.bf16.mxu0 0
    %246 = vmatpush1.bf16.msra.mxu0 %v224
    %247 = vmatprep.subr.bf16.mxu0 0
    %248 = vmatpush1.bf16.msra.mxu0 %v225
    %249 = vmatprep.subr.bf16.mxu0 0
    %250 = vmatpush1.bf16.msra.mxu0 %v226
    %251 = vmatprep.subr.bf16.mxu0 0
    %252 = vmatpush1.bf16.msra.mxu0 0
    %253 = vmatprep.subr.bf16.mxu0 0
    %254 = vmatpush1.bf16.msra.mxu0 0
    %255 = vmatprep.subr.bf16.mxu0 0
    %256 = vmatpush1.bf16.msra.mxu0 0
    %257 = vmatprep.subr.bf16.mxu0 0
    %258 = vmatpush1.bf16.msra.mxu0 0
    %259 = vmatprep.subr.bf16.mxu0 0
    %260 = vmatpush1.bf16.msra.mxu0 0
    %261 = vmatprep.subr.bf16.mxu0 0
    %262 = vmatpush1.bf16.msra.mxu0 0
    %263 = vmatprep.subr.bf16.mxu0 0
    %264 = vmatpush1.bf16.msra.mxu0 0
    %265 = vmatprep.subr.bf16.mxu0 0
    %266 = vmatpush1.bf16.msra.mxu0 0
    %267 = vmatprep.mubr.bf16.mxu0 0
    %268 = vmatmul.mubr.bf16.gmra.mrb[0].mxu0 %v163
    %v269 = vpop.f32.mrb[0].mxu0
    %v270 = vadd.f32 %v185, %v269
    %v271 = vpop.f32.mrb[0].mxu0
    %v272 = vpop.f32.mrb[0].mxu0
    %v273 = vadd.f32 %v185, %v272
    %v274 = vpop.f32.mrb[0].mxu0
    %275 = vdwg.mxu0
    %276 = vst [vmem:[%s5] sm:$0xff] %v270
    %277 = vst [vmem:[%s5 + $0x8] sm:$0xff] %v273
    // Predicated region
    $region30: #{_lambda_.1} parent=1 // pred_check
      _
    $region31: #{_lambda_.1} parent=1 // pred_check_branch
      %279 = sbr.rel (0) target = $region33
    $region32: #{_lambda_.1} parent=1 // pred_region
      _
    $region33: #{_lambda_.1} parent=1 // pred_fallthru
      _
    // Predicated region
    $region34: #{_lambda_.1} parent=1 // pred_check
      _
    $region35: #{_lambda_.1} parent=1 // pred_check_branch
      %281 = sbr.rel (0) target = $region37
    $region36: #{_lambda_.1} parent=1 // pred_region
      _
    $region37: #{_lambda_.1} parent=1 // pred_fallthru
      _
    %282 = vsyncpa [#allocation4], 1

</llo_original>
